<compile_context>
chip_gen: v7x
topology: tpu7x:2x2x1
jax: 0.10.0
libtpu: 0.0.40
codegen_flags: <defaults>
</compile_context>

<pallas_src>
import jax
import jax.numpy as jnp
from jax.experimental import pallas as pl
from jax.experimental.pallas import tpu as pltpu

_MiB = 1024 * 1024


# --------------------------------------------------------------------------------------
# Kernel body
# --------------------------------------------------------------------------------------
def _make_clip_loss_kernel(compute_dtype):
    f32 = jnp.float32

    def kernel(x_ref, xd_ref, rowloss_ref, trace_ref, cmax_ref, csum_ref,
               rl_acc, tr_acc):
        """One (TM, N) row-tile of the (N, N) logits matrix.

        Outputs (revisited across the trailing 'arbitrary' grid axis, per row-group):
          rowloss_ref : (1, 1, 1)  sum_i ( logsumexp(row_i) - logits[i, i] )
          trace_ref   : (1, 1, 1)  sum_i logits[i, i]
          cmax_ref    : (1, 1, N)  running per-column max           (flash-style)
          csum_ref    : (1, 1, N)  running per-column sum of exp(x - col_max)
        Scratch:
          rl_acc / tr_acc : (1, 1) f32 VMEM accumulators (written out on last tile).
        """
        t = pl.program_id(1)
        n_tiles = pl.num_programs(1)

        @pl.when(t == 0)
        def _init():
            rl_acc[...] = jnp.zeros_like(rl_acc)
            tr_acc[...] = jnp.zeros_like(tr_acc)
            cmax_ref[...] = jnp.full(cmax_ref.shape, -jnp.inf, dtype=cmax_ref.dtype)
            csum_ref[...] = jnp.zeros_like(csum_ref)

        x = x_ref[...].astype(compute_dtype)          # (TM, N), compute dtype
        tm = x.shape[0]

        # ---- diagonal from the (TM, TM) diagonal sub-block (cheap mask) ----
        xd = xd_ref[...].astype(f32)                  # (TM, TM)
        rid = jax.lax.broadcasted_iota(jnp.int32, (tm, tm), 0)
        cid = jax.lax.broadcasted_iota(jnp.int32, (tm, tm), 1)
        tile_trace = jnp.sum(jnp.where(rid == cid, xd, 0.0))

        # ---- row direction: exact per-row logsumexp (XLU lane reduce, f32 accum) ----
        rmax = jnp.max(x, axis=1, keepdims=True)       # (TM, 1)
        e_row = jnp.exp(x - rmax)                      # (TM, N)  EUP (bf16 on v6e/v7x)
        row_sum = jnp.sum(e_row.astype(f32), axis=1, keepdims=True)
        row_lse = jnp.log(row_sum) + rmax.astype(f32)  # (TM, 1)  f32
        rl_acc[...] += jnp.sum(row_lse) - tile_trace
        tr_acc[...] += tile_trace

        # ---- column direction: flash-style running per-column stats (f32 carry) ----
        # Note: assumes finite logits (no fully -inf masked columns), as in CLIP.
        m_old = cmax_ref[0]                            # (1, N) f32
        s_old = csum_ref[0]                            # (1, N) f32
        tile_cmax = jnp.max(x, axis=0, keepdims=True).astype(f32)
        m_new = jnp.maximum(m_old, tile_cmax)
        # m_new is a max over compute-dtype-representable values, so the cast is exact.
        e_col = jnp.exp(x - m_new.astype(compute_dtype))
        col_sum = jnp.sum(e_col.astype(f32), axis=0, keepdims=True)
        csum_ref[0] = s_old * jnp.exp(m_old - m_new) + col_sum   # exp(-inf)=0 on tile 0
        cmax_ref[0] = m_new

        @pl.when(t == n_tiles - 1)
        def _finalize():
            rowloss_ref[...] = jnp.reshape(rl_acc[...], rowloss_ref.shape)
            trace_ref[...] = jnp.reshape(tr_acc[...], trace_ref.shape)

    return kernel


# --------------------------------------------------------------------------------------
# Hardware-aware configuration helpers
# --------------------------------------------------------------------------------------
def _device_kind():
    try:
        return jax.devices()[0].device_kind.lower()
    except Exception:
        return ""


def _vmem_capacity_bytes():
    try:
        return int(pltpu.get_tpu_info().vmem_capacity_bytes)
    except Exception:
        pass
    kind = _device_kind()
    return 64 * _MiB if "v7" in kind else 128 * _MiB


def _default_compute_dtype():
    kind = _device_kind()
    # bf16 VPU/EUP exists on v6e / v7x; v5e (and older) would emulate it -> keep f32.
    if "v6" in kind or "v7" in kind:
        return jnp.bfloat16
    return jnp.float32


def _num_tensorcores():
    kind = _device_kind()
    # Megacore parts (2 TensorCores behind one device): v4, v5p, v7x.
    if "v7" in kind or "v4" in kind or "v5p" in kind:
        return 2
    return 1


def _tile_working_set_bytes(tm, n, in_bytes, compute_bytes):
    # Double-buffered (TM, N) row slab + (TM, TM) diag block (native dtype)
    dma = 2 * tm * n * in_bytes + 2 * tm * tm * in_bytes
    # In-kernel temporaries: x + exp tile in compute dtype + one f32 cast tile,
    # plus the (1, N) column stats (tiny).
    body = tm * n * (2 * compute_bytes + 4) + 4 * n * 4
    return dma + body


def _pick_row_tile(n, in_bytes, compute_bytes, budget_bytes):
    # Whole matrix as one block for small N (block dims == full dims, so the
    # (8, 128) divisibility requirement does not apply).
    if n <= 1024 and _tile_working_set_bytes(n, n, in_bytes, compute_bytes) <= budget_bytes:
        return n
    # Otherwise the largest lane-aligned (multiple-of-128) tile dividing N that fits.
    for tm in (1024, 896, 768, 640, 512, 384, 256, 128):
        if n % tm == 0 and _tile_working_set_bytes(tm, n, in_bytes, compute_bytes) <= budget_bytes:
            return tm
    if _tile_working_set_bytes(n, n, in_bytes, compute_bytes) <= budget_bytes:
        return n
    raise ValueError(
        f"No valid row tile for N={n}: need a multiple-of-128 divisor of N whose "
        f"working set fits the {budget_bytes / _MiB:.1f} MiB VMEM budget. "
        f"Pad N to a multiple of 128 or pass row_tile explicitly.")


# --------------------------------------------------------------------------------------
# Public wrapper
# --------------------------------------------------------------------------------------
def clip_contrastive_loss(logits, *, row_tile=None, compute_dtype=None):
    """CLIP contrastive loss of a square (N, N) logits matrix (scalar f32 result).

    Matches (CE(logits, arange(N)) + CE(logits.T, arange(N))) / 2 computed in f32.
    `compute_dtype` controls the in-kernel exp/subtract dtype (auto: bf16 on v6e/v7x,
    f32 on v5e). Input is consumed in its native dtype (no up-cast in HBM).
    """
    if logits.ndim != 2 or logits.shape[0] != logits.shape[1]:
        raise ValueError("CLIP contrastive loss expects a square (N, N) logits matrix")
    n = logits.shape[0]

    if compute_dtype is None:
        compute_dtype = _default_compute_dtype()
    compute_dtype = jnp.dtype(compute_dtype)
    in_bytes = jnp.dtype(logits.dtype).itemsize
    compute_bytes = compute_dtype.itemsize

    vmem_cap = _vmem_capacity_bytes()
    vmem_limit = min(int(0.75 * vmem_cap), 100 * _MiB)   # ~48 MiB on v7x, ~96 MiB v5e/v6e
    budget = int(0.6 * vmem_limit)

    if row_tile is None:
        tm = _pick_row_tile(n, in_bytes, compute_bytes, budget)
    else:
        tm = int(row_tile)
        if n % tm != 0:
            raise ValueError(f"row_tile={tm} must divide N={n}")
        if tm != n and tm % 128 != 0:
            raise ValueError(f"row_tile={tm} must be a multiple of 128 or equal to N={n}")
        ws = _tile_working_set_bytes(tm, n, in_bytes, compute_bytes)
        if ws > budget:
            raise ValueError(
                f"row_tile={tm} needs ~{ws / _MiB:.1f} MiB VMEM working set, exceeding the "
                f"{budget / _MiB:.1f} MiB budget for this chip ({vmem_cap // _MiB} MiB VMEM). "
                f"Use a smaller row_tile.")

    total_tiles = n // tm
    n_cores = _num_tensorcores()
    # TODO(synk): when total_tiles is odd on a 2-TensorCore part, an uneven split (or
    # padding to an even tile count) would keep both cores busy; we fall back to 1 group.
    n_groups = n_cores if (total_tiles >= n_cores and total_tiles % n_cores == 0) else 1
    tiles_per_group = total_tiles // n_groups

    out_shape = (
        jax.ShapeDtypeStruct((n_groups, 1, 1), jnp.float32),   # sum(row_lse) - trace
        jax.ShapeDtypeStruct((n_groups, 1, 1), jnp.float32),   # trace partial
        jax.ShapeDtypeStruct((n_groups, 1, n), jnp.float32),   # running per-column max
        jax.ShapeDtypeStruct((n_groups, 1, n), jnp.float32),   # running per-column sum(exp)
    )

    def row_map(gi, ti):
        return (gi * tiles_per_group + ti, 0)

    def diag_map(gi, ti):
        r = gi * tiles_per_group + ti
        return (r, r)

    # TODO(synk): on v5e, if profiling shows exposed DMA, set pipeline_mode=pl.Buffered(3)
    # on the row-slab BlockSpec.
    grid_spec = pltpu.PrefetchScalarGridSpec(
        num_scalar_prefetch=0,
        grid=(n_groups, tiles_per_group),
        in_specs=[
            pl.BlockSpec((tm, n), row_map),     # (TM, N) row slab, native dtype
            pl.BlockSpec((tm, tm), diag_map),   # (TM, TM) diagonal block, native dtype
        ],
        out_specs=[
            pl.BlockSpec((1, 1, 1), lambda gi, ti: (gi, 0, 0)),
            pl.BlockSpec((1, 1, 1), lambda gi, ti: (gi, 0, 0)),
            pl.BlockSpec((1, 1, n), lambda gi, ti: (gi, 0, 0)),
            pl.BlockSpec((1, 1, n), lambda gi, ti: (gi, 0, 0)),
        ],
        scratch_shapes=[
            pltpu.VMEM((1, 1), jnp.float32),    # row-loss accumulator
            pltpu.VMEM((1, 1), jnp.float32),    # trace accumulator
        ],
    )

    rowloss, trace, cmax, csum = pl.pallas_call(
        _make_clip_loss_kernel(compute_dtype),
        out_shape=out_shape,
        grid_spec=grid_spec,
        compiler_params=pltpu.CompilerParams(
            dimension_semantics=("parallel", "arbitrary"),
            vmem_limit_bytes=vmem_limit,
        ),
    )(logits, logits)   # same array feeds both the row slab and the diagonal block

    # O(G*N) combine of the per-group partial statistics (plain JAX epilogue).
    inv_n = 1.0 / n
    loss_row = jnp.sum(rowloss) * inv_n
    tr = jnp.sum(trace)
    m = jnp.max(cmax, axis=0)                          # (1, N)
    s = jnp.sum(csum * jnp.exp(cmax - m), axis=0)      # (1, N)
    col_lse = jnp.log(s) + m
    loss_col = (jnp.sum(col_lse) - tr) * inv_n
    return 0.5 * (loss_row + loss_col)


# --------------------------------------------------------------------------------------
# Reference + tests
# --------------------------------------------------------------------------------------
def _reference_loss(logits):
    """Plain-JAX reference matching torch.nn.CrossEntropyLoss semantics."""
    logits = logits.astype(jnp.float32)

    def ce(lg):
        lse = jax.scipy.special.logsumexp(lg, axis=1)
        picked = jnp.diagonal(lg)
        return jnp.mean(lse - picked)

    return (ce(logits) + ce(logits.T)) / 2.0


if __name__ == "__main__":
    key = jax.random.PRNGKey(0)
    k1, k2 = jax.random.split(key)

    # Case 1: small square logits, single block, f32 input, f32 compute (tight check).
    n1 = 16
    logits1 = jax.random.normal(k1, (n1, n1), dtype=jnp.float32) * 3.0
    out1 = jax.block_until_ready(clip_contrastive_loss(logits1, compute_dtype=jnp.float32))
    ref1 = _reference_loss(logits1)
    assert jnp.allclose(out1, ref1, atol=1e-5, rtol=1e-5), (out1, ref1)

    # Case 2: multi-tile grid with bf16 input, forced f32 compute — tight check of the
    # row tiling, diagonal-block fetch, flash column accumulation and group combine.
    n2 = 512
    logits2 = (jax.random.normal(k2, (n2, n2), dtype=jnp.float32) * 3.0).astype(jnp.bfloat16)
    out2 = jax.block_until_ready(
        clip_contrastive_loss(logits2, row_tile=128, compute_dtype=jnp.float32))
    ref2 = _reference_loss(logits2)
    assert jnp.allclose(out2, ref2, atol=1e-4, rtol=1e-4), (out2, ref2)

    # Case 3: same input with the auto compute dtype (bf16 exp path on v6e/v7x,
    # f32 on v5e) — looser tolerance to cover bf16 EUP/VPU rounding.
    out3 = jax.block_until_ready(clip_contrastive_loss(logits2, row_tile=128))
    assert jnp.allclose(out3, ref2, atol=3e-2, rtol=3e-2), (out3, ref2)

    print("KERNEL_OK")
</pallas_src>

<mosaic_0001>
module attributes {stable_mosaic.version = 11 : i64} {
  func.func @kernel(%arg0: i32, %arg1: i32, %arg2: memref<16x16xf32, #tpu.memory_space<vmem>>, %arg3: memref<16x16xf32, #tpu.memory_space<vmem>>, %arg4: memref<1x1x1xf32, #tpu.memory_space<vmem>>, %arg5: memref<1x1x1xf32, #tpu.memory_space<vmem>>, %arg6: memref<1x1x16xf32, #tpu.memory_space<vmem>>, %arg7: memref<1x1x16xf32, #tpu.memory_space<vmem>>, %arg8: memref<1x1xf32, #tpu.memory_space<vmem>>, %arg9: memref<1x1xf32, #tpu.memory_space<vmem>>) attributes {dimension_semantics = [#tpu.dimension_semantics<parallel>, #tpu.dimension_semantics<arbitrary>], iteration_bounds = array<i64: 1, 1>, scalar_prefetch = 0 : i64, scratch_operands = 2 : i64, tpu.core_type = #tpu.core_type<tc>, window_params = [{transform_indices = @transform_0, window_bounds = array<i64: 16, 16>}, {transform_indices = @transform_1, window_bounds = array<i64: 16, 16>}, {transform_indices = @transform_2, window_bounds = array<i64: 1, 1, 1>}, {transform_indices = @transform_3, window_bounds = array<i64: 1, 1, 1>}, {transform_indices = @transform_4, window_bounds = array<i64: 1, 1, 16>}, {transform_indices = @transform_5, window_bounds = array<i64: 1, 1, 16>}]} {
    %c0_i32 = arith.constant 0 : i32
    %0 = arith.cmpi eq, %arg1, %c0_i32 : i32
    %1 = arith.extui %0 : i1 to i32
    %c0_i32_0 = arith.constant 0 : i32
    %2 = arith.cmpi ne, %1, %c0_i32_0 : i32
    scf.if %2 {
      %cst_32 = arith.constant 0.000000e+00 : f32
      %61 = vector.broadcast %cst_32 : f32 to vector<1x1xf32>
      %c0_33 = arith.constant 0 : index
      %c0_34 = arith.constant 0 : index
      %62 = vector.load %arg8[%c0_33, %c0_34] : memref<1x1xf32, #tpu.memory_space<vmem>>, vector<1x1xf32>
      tpu.vector_store %arg8[%c0_33, %c0_34], %61 {strides = array<i32>} : memref<1x1xf32, #tpu.memory_space<vmem>>, vector<1x1xf32>,
      %cst_35 = arith.constant 0.000000e+00 : f32
      %63 = vector.broadcast %cst_35 : f32 to vector<1x1xf32>
      %c0_36 = arith.constant 0 : index
      %c0_37 = arith.constant 0 : index
      %64 = vector.load %arg9[%c0_36, %c0_37] : memref<1x1xf32, #tpu.memory_space<vmem>>, vector<1x1xf32>
      tpu.vector_store %arg9[%c0_36, %c0_37], %63 {strides = array<i32>} : memref<1x1xf32, #tpu.memory_space<vmem>>, vector<1x1xf32>,
      %cst_38 = arith.constant 0xFF800000 : f32
      %65 = vector.broadcast %cst_38 : f32 to vector<1x1x16xf32>
      %c0_39 = arith.constant 0 : index
      %c0_40 = arith.constant 0 : index
      %c0_41 = arith.constant 0 : index
      %66 = vector.load %arg6[%c0_39, %c0_40, %c0_41] : memref<1x1x16xf32, #tpu.memory_space<vmem>>, vector<1x1x16xf32>
      tpu.vector_store %arg6[%c0_39, %c0_40, %c0_41], %65 {strides = array<i32>} : memref<1x1x16xf32, #tpu.memory_space<vmem>>, vector<1x1x16xf32>,
      %cst_42 = arith.constant 0.000000e+00 : f32
      %67 = vector.broadcast %cst_42 : f32 to vector<1x1x16xf32>
      %c0_43 = arith.constant 0 : index
      %c0_44 = arith.constant 0 : index
      %c0_45 = arith.constant 0 : index
      %68 = vector.load %arg7[%c0_43, %c0_44, %c0_45] : memref<1x1x16xf32, #tpu.memory_space<vmem>>, vector<1x1x16xf32>
      tpu.vector_store %arg7[%c0_43, %c0_44, %c0_45], %67 {strides = array<i32>} : memref<1x1x16xf32, #tpu.memory_space<vmem>>, vector<1x1x16xf32>,
    } else {
    }
    %c0 = arith.constant 0 : index
    %c0_1 = arith.constant 0 : index
    %3 = vector.load %arg2[%c0, %c0_1] : memref<16x16xf32, #tpu.memory_space<vmem>>, vector<16x16xf32>
    %c0_2 = arith.constant 0 : index
    %c0_3 = arith.constant 0 : index
    %4 = vector.load %arg3[%c0_2, %c0_3] : memref<16x16xf32, #tpu.memory_space<vmem>>, vector<16x16xf32>
    %5 = tpu.iota {dimensions = array<i32: 0>} : vector<16x16xi32>
    %6 = tpu.iota {dimensions = array<i32: 1>} : vector<16x16xi32>
    %7 = arith.cmpi eq, %5, %6 : vector<16x16xi32>
    %cst = arith.constant 0.000000e+00 : f32
    %8 = vector.broadcast %cst : f32 to vector<16x16xf32>
    %9 = arith.select %7, %4, %8 : vector<16x16xi1>, vector<16x16xf32>
    %10 = vector.shape_cast %9 : vector<16x16xf32> to vector<1x16x16xf32>
    %cst_4 = arith.constant dense<0.000000e+00> : vector<1xf32>
    %11 = vector.multi_reduction <add>, %10, %cst_4 [1, 2] : vector<1x16x16xf32> to vector<1xf32>
    %12 = vector.shape_cast %11 : vector<1xf32> to vector<1x1x1xf32>
    %13 = vector.extract %12[0, 0, 0] : f32 from vector<1x1x1xf32>
    %cst_5 = arith.constant dense<0xFF800000> : vector<16xf32>
    %14 = vector.multi_reduction <maximumf>, %3, %cst_5 [1] : vector<16x16xf32> to vector<16xf32>
    %15 = vector.shape_cast %14 : vector<16xf32> to vector<16x1xf32>
    %16 = vector.broadcast %15 : vector<16x1xf32> to vector<16x16xf32>
    %17 = arith.subf %3, %16 : vector<16x16xf32>
    %18 = math.exp %17 : vector<16x16xf32>
    %cst_6 = arith.constant dense<0.000000e+00> : vector<16xf32>
    %19 = vector.multi_reduction <add>, %18, %cst_6 [1] : vector<16x16xf32> to vector<16xf32>
    %20 = vector.shape_cast %19 : vector<16xf32> to vector<16x1xf32>
    %21 = math.log %20 : vector<16x1xf32>
    %22 = arith.addf %21, %15 : vector<16x1xf32>
    %c0_7 = arith.constant 0 : index
    %c0_8 = arith.constant 0 : index
    %23 = vector.load %arg8[%c0_7, %c0_8] : memref<1x1xf32, #tpu.memory_space<vmem>>, vector<1x1xf32>
    %24 = vector.shape_cast %22 : vector<16x1xf32> to vector<1x16x1xf32>
    %cst_9 = arith.constant dense<0.000000e+00> : vector<1xf32>
    %25 = vector.multi_reduction <add>, %24, %cst_9 [1, 2] : vector<1x16x1xf32> to vector<1xf32>
    %26 = vector.shape_cast %25 : vector<1xf32> to vector<1x1x1xf32>
    %27 = vector.extract %26[0, 0, 0] : f32 from vector<1x1x1xf32>
    %28 = arith.subf %27, %13 : f32
    %29 = vector.broadcast %28 : f32 to vector<1x1xf32>
    %30 = arith.addf %23, %29 : vector<1x1xf32>
    %c0_10 = arith.constant 0 : index
    %c0_11 = arith.constant 0 : index
    %31 = vector.load %arg8[%c0_10, %c0_11] : memref<1x1xf32, #tpu.memory_space<vmem>>, vector<1x1xf32>
    tpu.vector_store %arg8[%c0_10, %c0_11], %30 {strides = array<i32>} : memref<1x1xf32, #tpu.memory_space<vmem>>, vector<1x1xf32>,
    %c0_12 = arith.constant 0 : index
    %c0_13 = arith.constant 0 : index
    %32 = vector.load %arg9[%c0_12, %c0_13] : memref<1x1xf32, #tpu.memory_space<vmem>>, vector<1x1xf32>
    %33 = vector.broadcast %13 : f32 to vector<1x1xf32>
    %34 = arith.addf %32, %33 : vector<1x1xf32>
    %c0_14 = arith.constant 0 : index
    %c0_15 = arith.constant 0 : index
    %35 = vector.load %arg9[%c0_14, %c0_15] : memref<1x1xf32, #tpu.memory_space<vmem>>, vector<1x1xf32>
    tpu.vector_store %arg9[%c0_14, %c0_15], %34 {strides = array<i32>} : memref<1x1xf32, #tpu.memory_space<vmem>>, vector<1x1xf32>,
    %c0_16 = arith.constant 0 : index
    %c0_17 = arith.constant 0 : index
    %c0_18 = arith.constant 0 : index
    %36 = vector.load %arg6[%c0_16, %c0_17, %c0_18] : memref<1x1x16xf32, #tpu.memory_space<vmem>>, vector<1x1x16xf32>
    %37 = vector.shape_cast %36 : vector<1x1x16xf32> to vector<1x16xf32>
    %c0_19 = arith.constant 0 : index
    %c0_20 = arith.constant 0 : index
    %c0_21 = arith.constant 0 : index
    %38 = vector.load %arg7[%c0_19, %c0_20, %c0_21] : memref<1x1x16xf32, #tpu.memory_space<vmem>>, vector<1x1x16xf32>
    %39 = vector.shape_cast %38 : vector<1x1x16xf32> to vector<1x16xf32>
    %cst_22 = arith.constant dense<0xFF800000> : vector<16xf32>
    %40 = vector.multi_reduction <maximumf>, %3, %cst_22 [0] : vector<16x16xf32> to vector<16xf32>
    %41 = vector.shape_cast %40 : vector<16xf32> to vector<1x16xf32>
    %42 = arith.maximumf %37, %41 : vector<1x16xf32>
    %43 = vector.broadcast %42 : vector<1x16xf32> to vector<16x16xf32>
    %44 = arith.subf %3, %43 : vector<16x16xf32>
    %45 = math.exp %44 : vector<16x16xf32>
    %cst_23 = arith.constant dense<0.000000e+00> : vector<16xf32>
    %46 = vector.multi_reduction <add>, %45, %cst_23 [0] : vector<16x16xf32> to vector<16xf32>
    %47 = vector.shape_cast %46 : vector<16xf32> to vector<1x16xf32>
    %48 = arith.subf %37, %42 : vector<1x16xf32>
    %49 = math.exp %48 : vector<1x16xf32>
    %50 = arith.mulf %39, %49 : vector<1x16xf32>
    %51 = arith.addf %50, %47 : vector<1x16xf32>
    %c0_24 = arith.constant 0 : index
    %c0_25 = arith.constant 0 : index
    %c0_26 = arith.constant 0 : index
    %52 = vector.load %arg7[%c0_24, %c0_25, %c0_26] : memref<1x1x16xf32, #tpu.memory_space<vmem>>, vector<1x1x16xf32>
    %53 = vector.shape_cast %52 : vector<1x1x16xf32> to vector<1x16xf32>
    %54 = vector.shape_cast %51 : vector<1x16xf32> to vector<1x1x16xf32>
    tpu.vector_store %arg7[%c0_24, %c0_25, %c0_26], %54 {strides = array<i32>} : memref<1x1x16xf32, #tpu.memory_space<vmem>>, vector<1x1x16xf32>,
    %c0_27 = arith.constant 0 : index
    %c0_28 = arith.constant 0 : index
    %c0_29 = arith.constant 0 : index
    %55 = vector.load %arg6[%c0_27, %c0_28, %c0_29] : memref<1x1x16xf32, #tpu.memory_space<vmem>>, vector<1x1x16xf32>
    %56 = vector.shape_cast %55 : vector<1x1x16xf32> to vector<1x16xf32>
    %57 = vector.shape_cast %42 : vector<1x16xf32> to vector<1x1x16xf32>
    tpu.vector_store %arg6[%c0_27, %c0_28, %c0_29], %57 {strides = array<i32>} : memref<1x1x16xf32, #tpu.memory_space<vmem>>, vector<1x1x16xf32>,
    %c0_i32_30 = arith.constant 0 : i32
    %58 = arith.cmpi eq, %arg1, %c0_i32_30 : i32
    %59 = arith.extui %58 : i1 to i32
    %c0_i32_31 = arith.constant 0 : i32
    %60 = arith.cmpi ne, %59, %c0_i32_31 : i32
    scf.if %60 {
      %c0_32 = arith.constant 0 : index
      %c0_33 = arith.constant 0 : index
      %61 = vector.load %arg8[%c0_32, %c0_33] : memref<1x1xf32, #tpu.memory_space<vmem>>, vector<1x1xf32>
      %62 = vector.shape_cast %61 : vector<1x1xf32> to vector<1x1x1xf32>
      %c0_34 = arith.constant 0 : index
      %c0_35 = arith.constant 0 : index
      %c0_36 = arith.constant 0 : index
      %63 = vector.load %arg4[%c0_34, %c0_35, %c0_36] : memref<1x1x1xf32, #tpu.memory_space<vmem>>, vector<1x1x1xf32>
      tpu.vector_store %arg4[%c0_34, %c0_35, %c0_36], %62 {strides = array<i32>} : memref<1x1x1xf32, #tpu.memory_space<vmem>>, vector<1x1x1xf32>,
      %c0_37 = arith.constant 0 : index
      %c0_38 = arith.constant 0 : index
      %64 = vector.load %arg9[%c0_37, %c0_38] : memref<1x1xf32, #tpu.memory_space<vmem>>, vector<1x1xf32>
      %65 = vector.shape_cast %64 : vector<1x1xf32> to vector<1x1x1xf32>
      %c0_39 = arith.constant 0 : index
      %c0_40 = arith.constant 0 : index
      %c0_41 = arith.constant 0 : index
      %66 = vector.load %arg5[%c0_39, %c0_40, %c0_41] : memref<1x1x1xf32, #tpu.memory_space<vmem>>, vector<1x1x1xf32>
      tpu.vector_store %arg5[%c0_39, %c0_40, %c0_41], %65 {strides = array<i32>} : memref<1x1x1xf32, #tpu.memory_space<vmem>>, vector<1x1x1xf32>,
    } else {
    }
    return
  }
  func.func @transform_0(%arg0: i32, %arg1: i32) -> (i32, i32) {
    %c1_i32 = arith.constant 1 : i32
    %0 = arith.muli %arg0, %c1_i32 : i32
    %1 = arith.addi %0, %arg1 : i32
    %c0_i32 = arith.constant 0 : i32
    %c0_i32_0 = arith.constant 0 : i32
    return %1, %c0_i32 : i32, i32
  }
  func.func @transform_1(%arg0: i32, %arg1: i32) -> (i32, i32) {
    %c1_i32 = arith.constant 1 : i32
    %0 = arith.muli %arg0, %c1_i32 : i32
    %1 = arith.addi %0, %arg1 : i32
    %c0_i32 = arith.constant 0 : i32
    return %1, %1 : i32, i32
  }
  func.func @transform_2(%arg0: i32, %arg1: i32) -> (i32, i32, i32) {
    %c0_i32 = arith.constant 0 : i32
    %c0_i32_0 = arith.constant 0 : i32
    %c0_i32_1 = arith.constant 0 : i32
    return %arg0, %c0_i32, %c0_i32_0 : i32, i32, i32
  }
  func.func @transform_3(%arg0: i32, %arg1: i32) -> (i32, i32, i32) {
    %c0_i32 = arith.constant 0 : i32
    %c0_i32_0 = arith.constant 0 : i32
    %c0_i32_1 = arith.constant 0 : i32
    return %arg0, %c0_i32, %c0_i32_0 : i32, i32, i32
  }
  func.func @transform_4(%arg0: i32, %arg1: i32) -> (i32, i32, i32) {
    %c0_i32 = arith.constant 0 : i32
    %c0_i32_0 = arith.constant 0 : i32
    %c0_i32_1 = arith.constant 0 : i32
    return %arg0, %c0_i32, %c0_i32_0 : i32, i32, i32
  }
  func.func @transform_5(%arg0: i32, %arg1: i32) -> (i32, i32, i32) {
    %c0_i32 = arith.constant 0 : i32
    %c0_i32_0 = arith.constant 0 : i32
    %c0_i32_1 = arith.constant 0 : i32
    return %arg0, %c0_i32, %c0_i32_0 : i32, i32, i32
  }
}

</mosaic_0001>

<llo_original>
// kernel: tpu_custom_call.1
$region0: #{tpu_custom_call.1}
  #allocation0 [shape = 'u32[]', space=smem, size = 0x4, offset = 0x4, fixed_abs, tag = 'smem constant byte address 0x4 - core index']
  #allocation1 [shape = 'u32[144,128]{1,0:T(1,128)}', space=vmem, size = 0x12000, scoped, tag = 'internal scratch']
  #allocation2 [shape = 'f32[1,1]{1,0:T(1,128)}', space=vmem, size = 0x200, scoped, tag = 'scratch operand']
  #allocation3 [shape = 'f32[1,1]{1,0:T(1,128)}', space=vmem, size = 0x200, scoped, tag = 'scratch operand']
  %s0 = inlined_call_operand.hbm [shape: f32[16,16], index: 0, kind: input, shape index: {}]
  %s1 = inlined_call_operand.hbm [shape: f32[16,16], index: 1, kind: input, shape index: {}]
  %s2 = inlined_call_operand.hbm [shape: f32[1,1,1], index: 2, kind: output, shape index: {0}]
  %s3 = inlined_call_operand.hbm [shape: f32[1,1,1], index: 3, kind: output, shape index: {1}]
  %s4 = inlined_call_operand.hbm [shape: f32[1,1,16], index: 4, kind: output, shape index: {2}]
  %s5 = inlined_call_operand.hbm [shape: f32[1,1,16], index: 5, kind: output, shape index: {3}]
  %6 = xla_tuple %s2, %s3, %s4, %s5
  %s7 = sld [smem:[#allocation0]]
  $region58: #{tpu_custom_call.1} parent=0
    _
  %s9 = ssub.s32 1, %s7
  %s10 = scalar_select 0, %s9, %s7
  $region1: #{tpu_custom_call.1} parent=0
    #allocation4 [shape = 'u8[8192]{0}', space=vmem, size = 0x2000, scoped, tag = 'input window, operand 0, single buffered']
    #allocation5 [shape = 's32[1]{0}', space=sflag, size = 0x4, scoped, tag = 'scoped memory for tpu_custom_call.1']
    #allocation6 [shape = 's32[1]{0}', space=sflag, size = 0x4, scoped, tag = 'scoped memory for tpu_custom_call.1']
    #allocation7 [shape = 'u8[8192]{0}', space=vmem, size = 0x2000, scoped, tag = 'input window, operand 1, single buffered']
    #allocation8 [shape = 's32[1]{0}', space=sflag, size = 0x4, scoped, tag = 'scoped memory for tpu_custom_call.1']
    #allocation9 [shape = 'u8[512]{0}', space=vmem, size = 0x400, scoped, tag = 'output window, operand 0, single buffered']
    #allocation10 [shape = 'u8[512]{0}', space=vmem, size = 0x400, scoped, tag = 'output window, operand 1, single buffered']
    #allocation11 [shape = 's32[1]{0}', space=sflag, size = 0x4, scoped, tag = 'scoped memory for tpu_custom_call.1']
    #allocation12 [shape = 'u8[512]{0}', space=vmem, size = 0x400, scoped, tag = 'output window, operand 2, single buffered']
    #allocation13 [shape = 'u8[512]{0}', space=vmem, size = 0x400, scoped, tag = 'output window, operand 3, single buffered']
    #allocation14 [shape = 's32[1]{0}', space=sflag, size = 0x4, scoped, tag = 'scoped memory for tpu_custom_call.1']
    %11 = vsyncpa [#allocation5], 0
    %12 = vsyncpa [#allocation8], 0
    %13 = vsyncpa [#allocation6], 0
    %14 = vsyncpa [#allocation11], 0
    %15 = vsyncpa [#allocation14], 0
    // Predicated region
    $region2: #{tpu_custom_call.1} parent=1 // pred_check
      _
    $region3: #{tpu_custom_call.1} parent=1 // pred_check_branch
      %17 = sbr.rel (0) target = $region5
    $region4: #{tpu_custom_call.1} parent=1 // pred_region
      %s18 = sadd.s32 0, 0
      %s19 = smul.u32 2, %s18
      %s21 = ssub.s32 256, 256
      %22 = vsyncadd [#allocation5], %s21
      %s23 = smul.addr %s19, 128
      %s24 = scalar_lea.hbm %s0, %s23
      %s25 = sshll.u32 [#allocation4], 4
      %s26 = int_to_ptr.vmem [resolvable:$true] %s25
      %31 = dma.hbm_to_vmem [thread:$0]  %s24, 256, %s26, [#allocation5], 128, 128, 8
    $region5: #{tpu_custom_call.1} parent=1 // pred_fallthru
      _
    // Predicated region
    $region6: #{tpu_custom_call.1} parent=1 // pred_check
      _
    $region7: #{tpu_custom_call.1} parent=1 // pred_check_branch
      %33 = sbr.rel (0) target = $region9
    $region8: #{tpu_custom_call.1} parent=1 // pred_region
      %s34 = sadd.s32 0, 0
      %s35 = smul.u32 2, %s34
      %s37 = ssub.s32 256, 256
      %38 = vsyncadd [#allocation8], %s37
      %s39 = sadd.s32 %s34, %s35
      %s40 = smul.addr %s39, 128
      %s41 = scalar_lea.hbm %s1, %s40
      %s42 = sshll.u32 [#allocation7], 4
      %s43 = int_to_ptr.vmem [resolvable:$true] %s42
      %48 = dma.hbm_to_vmem [thread:$0]  %s41, 256, %s43, [#allocation8], 128, 128, 8
    $region9: #{tpu_custom_call.1} parent=1 // pred_fallthru
      _
    // Predicated region
    $region10: #{tpu_custom_call.1} parent=1 // pred_check
      _
    $region11: #{tpu_custom_call.1} parent=1 // pred_check_branch
      %50 = sbr.rel (0) target = $region13
    $region12: #{tpu_custom_call.1} parent=1 // pred_region
      %51 = dma.done [#allocation5], 256
    $region13: #{tpu_custom_call.1} parent=1 // pred_fallthru
      _
    // Predicated region
    $region14: #{tpu_custom_call.1} parent=1 // pred_check
      _
    $region15: #{tpu_custom_call.1} parent=1 // pred_check_branch
      %53 = sbr.rel (0) target = $region17
    $region16: #{tpu_custom_call.1} parent=1 // pred_region
      %54 = dma.done [#allocation8], 256
    $region17: #{tpu_custom_call.1} parent=1 // pred_fallthru
      _
    %s55 = sadd.s32 0, 0
    %s56 = smul.u32 2, %s55
    %s57 = sadd.s32 0, 0
    %s58 = smul.u32 2, %s57
    %p59 = scmp.eq.s32.totalorder 0, 0
    // Predicated region
    $region18: #{tpu_custom_call.1} parent=1 // pred_check
      %p60 = pneg %p59
    $region19: #{tpu_custom_call.1} parent=1 // pred_check_branch
      %62 = sbr.rel (%p60) target = $region21
    $region20: #{tpu_custom_call.1} parent=1 // pred_region
      %vm63 = vcmask 0
      %64 = vst.msk [vmem:[#allocation2] sm:$0x1] %vm63, 0.0
      %65 = vst.msk [vmem:[#allocation3] sm:$0x1] %vm63, 0.0
      %vm66 = vcmask 122880
      %67 = vst.msk [vmem:[#allocation12] sm:$0x1] %vm66, -inf
      %68 = vst.msk [vmem:[#allocation13] sm:$0x1] %vm66, 0.0
    $region21: #{tpu_custom_call.1} parent=1 // pred_fallthru
      _
    %v69 = vld [vmem:[#allocation4] sm:$0xff]
    %v70 = vld [vmem:[#allocation4 + $0x8] sm:$0xff]
    %v71 = vld [vmem:[#allocation7] sm:$0xff]
    %v72 = vld [vmem:[#allocation7 + $0x8] sm:$0xff]
    %v73 = vlaneseq
    %v74 = vshrl.u32 %v73, 7
    %v75 = vadd.s32 %v74, 8
    %v76 = vlaneseq
    %v77 = vand.u32 %v76, 127
    %vm78 = vcmp.eq.s32.totalorder %v74, %v77
    %vm79 = vcmp.eq.s32.totalorder %v75, %v77
    %v80 = vsel %vm78, %v71, 0.0
    %v81 = vsel %vm79, %v72, 0.0
    %vm82 = vcmask 130048
    %v83 = vsel %vm82, %v80, 0.0
    %v84 = vsel %vm82, %v81, 0.0
    %v85 = vadd.f32 %v83, %v84
    %86 = vadd.xlane.f32.xlu0 %v85
    %v87 = vpop.xlane.xlu0 %86
    %v88 = vrot.slane %v87, 4
    %v89 = vadd.f32 %v87, %v88
    %v90 = vrot.slane %v89, 2
    %v91 = vadd.f32 %v89, %v90
    %v92 = vrot.slane %v91, 1
    %v93 = vadd.f32 %v91, %v92
    %s94 = vtos %v93
    %v95 = vsel %vm82, %v69, -inf
    %96 = vmax.xlane.f32.xlu0 %v95
    %v97 = vpop.xlane.xlu0 %96
    %v98 = vsel %vm82, %v70, -inf
    %99 = vmax.xlane.f32.xlu0 %v98
    %v100 = vpop.xlane.xlu0 %99
    %v101 = vsub.f32 %v69, %v97
    %v102 = vsub.f32 %v70, %v100
    %v103 = vmul.f32 %v101, 1.442695
    %v104 = vpow.pop %v103
    %v105 = vmul.f32 %v102, 1.442695
    %v106 = vpow.pop %v105
    %v107 = vsel %vm82, %v104, 0.0
    %108 = vadd.xlane.f32.xlu0 %v107
    %v109 = vpop.xlane.xlu0 %108
    %v110 = vsel %vm82, %v106, 0.0
    %111 = vadd.xlane.f32.xlu0 %v110
    %v112 = vpop.xlane.xlu0 %111
    %v113 = vlog2.pop %v109
    %v114 = vmul.f32 %v113, 0.6931472
    %v115 = vlog2.pop %v112
    %v116 = vmul.f32 %v115, 0.6931472
    %v117 = vadd.f32 %v114, %v97
    %v118 = vadd.f32 %v116, %v100
    %v119 = vld [vmem:[#allocation2] sm:$0x1]
    %vm120 = vcmask 7168
    %v121 = vsel %vm120, %v117, 0.0
    %v122 = vsel %vm120, %v118, 0.0
    %v123 = vadd.f32 %v121, %v122
    %124 = vadd.xlane.f32.xlu0 %v123
    %v125 = vpop.xlane.xlu0 %124
    %v126 = vrot.slane %v125, 4
    %v127 = vadd.f32 %v125, %v126
    %v128 = vrot.slane %v127, 2
    %v129 = vadd.f32 %v127, %v128
    %v130 = vrot.slane %v129, 1
    %v131 = vadd.f32 %v129, %v130
    %s132 = vtos %v131
    %s133 = ssub.f32 %s132, %s94
    %v134 = vstv %s133
    %v135 = vadd.f32 %v119, %v134
    %vm136 = vcmask 0
    %137 = vst.msk [vmem:[#allocation2] sm:$0x1] %vm136, %v135
    %v138 = vld [vmem:[#allocation3] sm:$0x1]
    %v139 = vstv %s94
    %v140 = vadd.f32 %v138, %v139
    %141 = vst.msk [vmem:[#allocation3] sm:$0x1] %vm136, %v140
    %v142 = vld [vmem:[#allocation12] sm:$0x1]
    %v143 = vld [vmem:[#allocation13] sm:$0x1]
    %v144 = vmax.f32 %v95, %v98
    %v145 = vrot.slane %v144, 4
    %v146 = vmax.f32 %v144, %v145
    %v147 = vrot.slane %v146, 2
    %v148 = vmax.f32 %v146, %v147
    %v149 = vrot.slane %v148, 1
    %v150 = vmax.f32 %v148, %v149
    %v151 = vmax.f32 %v142, %v150
    %v153 = vlaneseq
    %v154 = vshrl.u32 %v153, 7
    %v155 = vsub.s32 0, %v154
    %v156 = vrot.slane %v151, %v155
    %v158 = vsub.f32 %v69, %v156
    %v159 = vsub.f32 %v70, %v156
    %v160 = vmul.f32 %v158, 1.442695
    %v161 = vpow.pop %v160
    %v162 = vmul.f32 %v159, 1.442695
    %v163 = vpow.pop %v162
    %v164 = vsel %vm82, %v161, 0.0
    %v165 = vsel %vm82, %v163, 0.0
    %v166 = vadd.f32 %v164, %v165
    %v167 = vrot.slane %v166, 4
    %v168 = vadd.f32 %v166, %v167
    %v169 = vrot.slane %v168, 2
    %v170 = vadd.f32 %v168, %v169
    %v171 = vrot.slane %v170, 1
    %v172 = vadd.f32 %v170, %v171
    %v173 = vsub.f32 %v142, %v151
    %v174 = vmul.f32 %v173, 1.442695
    %v175 = vpow.pop %v174
    %v176 = vmul.f32 %v143, %v175
    %v177 = vadd.f32 %v176, %v172
    %vm178 = vcmask 122880
    %179 = vst.msk [vmem:[#allocation13] sm:$0x1] %vm178, %v177
    %180 = vst.msk [vmem:[#allocation12] sm:$0x1] %vm178, %v151
    // Predicated region
    $region22: #{tpu_custom_call.1} parent=1 // pred_check
      %p181 = pneg %p59
    $region23: #{tpu_custom_call.1} parent=1 // pred_check_branch
      %183 = sbr.rel (%p181) target = $region25
    $region24: #{tpu_custom_call.1} parent=1 // pred_region
      %v184 = vld [vmem:[#allocation2] sm:$0x1]
      %185 = vst.msk [vmem:[#allocation9] sm:$0x1] %vm136, %v184
      %v186 = vld [vmem:[#allocation3] sm:$0x1]
      %187 = vst.msk [vmem:[#allocation10] sm:$0x1] %vm136, %v186
    $region25: #{tpu_custom_call.1} parent=1 // pred_fallthru
      _
    // Predicated region
    $region26: #{tpu_custom_call.1} parent=1 // pred_check
      _
    $region27: #{tpu_custom_call.1} parent=1 // pred_check_branch
      %189 = sbr.rel (0) target = $region29
    $region28: #{tpu_custom_call.1} parent=1 // pred_region
      %s191 = ssub.s32 16, 16
      %192 = vsyncadd [#allocation6], %s191
      %s194 = sshll.u32 [#allocation9], 4
      %s195 = int_to_ptr.vmem [resolvable:$true] %s194
      %197 = dma.vmem_to_hbm [thread:$0]  %s195, 16, %s2, [#allocation6]
    $region29: #{tpu_custom_call.1} parent=1 // pred_fallthru
      _
    // Predicated region
    $region30: #{tpu_custom_call.1} parent=1 // pred_check
      _
    $region31: #{tpu_custom_call.1} parent=1 // pred_check_branch
      %199 = sbr.rel (0) target = $region33
    $region32: #{tpu_custom_call.1} parent=1 // pred_region
      %s201 = ssub.s32 16, 16
      %202 = vsyncadd [#allocation11], %s201
      %s204 = sshll.u32 [#allocation10], 4
      %s205 = int_to_ptr.vmem [resolvable:$true] %s204
      %207 = dma.vmem_to_hbm [thread:$0]  %s205, 16, %s3, [#allocation11]
    $region33: #{tpu_custom_call.1} parent=1 // pred_fallthru
      _
    // Predicated region
    $region34: #{tpu_custom_call.1} parent=1 // pred_check
      _
    $region35: #{tpu_custom_call.1} parent=1 // pred_check_branch
      %209 = sbr.rel (0) target = $region37
    $region36: #{tpu_custom_call.1} parent=1 // pred_region
      %s211 = ssub.s32 16, 16
      %212 = vsyncadd [#allocation11], %s211
      %s214 = sshll.u32 [#allocation12], 4
      %s215 = int_to_ptr.vmem [resolvable:$true] %s214
      %217 = dma.vmem_to_hbm [thread:$0]  %s215, 16, %s4, [#allocation11]
    $region37: #{tpu_custom_call.1} parent=1 // pred_fallthru
      _
    // Predicated region
    $region38: #{tpu_custom_call.1} parent=1 // pred_check
      _
    $region39: #{tpu_custom_call.1} parent=1 // pred_check_branch
      %219 = sbr.rel (0) target = $region41
    $region40: #{tpu_custom_call.1} parent=1 // pred_region
      %s221 = ssub.s32 16, 16
      %222 = vsyncadd [#allocation14], %s221
      %s224 = sshll.u32 [#allocation13], 4
      %s225 = int_to_ptr.vmem [resolvable:$true] %s224
      %227 = dma.vmem_to_hbm [thread:$0]  %s225, 16, %s5, [#allocation14]
    $region41: #{tpu_custom_call.1} parent=1 // pred_fallthru
      _
    // Predicated region
    $region42: #{tpu_custom_call.1} parent=1 // pred_check
      _
    $region43: #{tpu_custom_call.1} parent=1 // pred_check_branch
      %229 = sbr.rel (0) target = $region45
    $region44: #{tpu_custom_call.1} parent=1 // pred_region
      %230 = dma.done [#allocation6], 16
    $region45: #{tpu_custom_call.1} parent=1 // pred_fallthru
      _
    // Predicated region
    $region46: #{tpu_custom_call.1} parent=1 // pred_check
      _
    $region47: #{tpu_custom_call.1} parent=1 // pred_check_branch
      %232 = sbr.rel (0) target = $region49
    $region48: #{tpu_custom_call.1} parent=1 // pred_region
      %233 = dma.done [#allocation11], 16
    $region49: #{tpu_custom_call.1} parent=1 // pred_fallthru
      _
    // Predicated region
    $region50: #{tpu_custom_call.1} parent=1 // pred_check
      _
    $region51: #{tpu_custom_call.1} parent=1 // pred_check_branch
      %235 = sbr.rel (0) target = $region53
    $region52: #{tpu_custom_call.1} parent=1 // pred_region
      %236 = dma.done [#allocation11], 16
    $region53: #{tpu_custom_call.1} parent=1 // pred_fallthru
      _
    // Predicated region
    $region54: #{tpu_custom_call.1} parent=1 // pred_check
      _
    $region55: #{tpu_custom_call.1} parent=1 // pred_check_branch
      %238 = sbr.rel (0) target = $region57
    $region56: #{tpu_custom_call.1} parent=1 // pred_region
      %239 = dma.done [#allocation14], 16
    $region57: #{tpu_custom_call.1} parent=1 // pred_fallthru
      _
    %240 = vsyncpa [#allocation5], 1
    %241 = vsyncpa [#allocation8], 1
    %242 = vsyncpa [#allocation6], 1
    %243 = vsyncpa [#allocation11], 1
    %244 = vsyncpa [#allocation14], 1

</llo_original>
